<compile_context>
chip_gen: v5e
topology: v5e:2x2
jax: 0.10.0
libtpu: 0.0.40
codegen_flags: <defaults>
</compile_context>

<pallas_src>
import functools
import re

import jax
import jax.numpy as jnp
from jax.experimental import pallas as pl
from jax.experimental.pallas import tpu as pltpu

_N_BISECT = 24              # 2^-24 < f32 resolution of tau in [-1, 0]
_NEG_INF = float("-inf")    # lane-pad value: never enters the support
_LANE = 128
_SUBLANE = 8
_STRIP_BYTES = 64 * 1024    # one f32 strip of z ~ 16 vregs (register-resident)


def _sparsemax_kernel(x_ref, o_ref, *, n_iters, strip_rows):
    """Row-wise sparsemax over the lane axis of one (block_rows, d_pad) tile."""
    block_rows = x_ref.shape[0]
    n_strips = block_rows // strip_rows

    def process_strip(r0):
        # Keep this strip of z register-resident across the whole bisection
        # (~16 vregs of f32 plus per-iteration temporaries — no VMEM spill /
        # per-iteration reload inside the unrolled loop).
        z = x_ref[pl.ds(r0, strip_rows), :].astype(jnp.float32)
        z = z - jnp.max(z, axis=-1, keepdims=True)          # per-row max(z) == 0

        # Bisection on tau in [-1, 0]: f(tau) = sum(relu(z - tau)) - 1 is
        # monotonically decreasing, f(-1) >= 0 (max element alone gives 1),
        # f(0) = -1, so the root stays bracketed.
        lo = jnp.full((strip_rows, 1), -1.0, dtype=jnp.float32)
        hi = jnp.zeros_like(lo)

        def bisect(_, carry):
            lo, hi = carry
            mid = 0.5 * (lo + hi)
            # Exact f32 reduction (VPU/XLU); see header for why this is not
            # pushed through the MXU.
            f = jnp.sum(jnp.maximum(z - mid, 0.0), axis=-1, keepdims=True) - 1.0
            go_up = f > 0.0                                  # root lies above mid
            return jnp.where(go_up, mid, lo), jnp.where(go_up, hi, mid)

        lo, hi = jax.lax.fori_loop(0, n_iters, bisect, (lo, hi), unroll=True)

        # Exact refinement: support = {j : z_j > mid}, tau = (sum_support - 1)/k.
        # k >= 1 always (row max 0 > mid since mid < 0), so no divide-by-zero;
        # ties at the boundary leave tau unchanged, reproducing the sort-based
        # SparsemaxFunction.forward result.
        mid = 0.5 * (lo + hi)
        in_sup = z > mid
        k = jnp.sum(in_sup.astype(jnp.float32), axis=-1, keepdims=True)
        s = jnp.sum(jnp.where(in_sup, z, 0.0), axis=-1, keepdims=True)
        tau = (s - 1.0) / k
        o_ref[pl.ds(r0, strip_rows), :] = jnp.maximum(z - tau, 0.0).astype(o_ref.dtype)

    if n_strips == 1:
        process_strip(0)
    else:
        align = strip_rows & -strip_rows          # power-of-two alignment hint

        @pl.loop(0, n_strips)
        def _(si):
            process_strip(pl.multiple_of(si * strip_rows, align))


def _round_up(v, m):
    return ((v + m - 1) // m) * m


def _largest_divisor_leq(n, cap):
    """Largest divisor of n that is <= cap (at least 1)."""
    cap = max(1, min(cap, n))
    best, d = 1, 1
    while d * d <= n:
        if n % d == 0:
            if d <= cap and d > best:
                best = d
            q = n // d
            if q <= cap and q > best:
                best = q
        d += 1
    return best


@functools.lru_cache(maxsize=None)
def _tpu_generation():
    try:
        dev = jax.devices()[0]
        if dev.platform != "tpu":
            return 6
        m = re.search(r"(\d+)", dev.device_kind)
        return int(m.group(1)) if m else 6
    except Exception:  # pragma: no cover - defensive default
        return 6


def _choose_block_rows(n_rows, d_pad, row_align, itemsize, gen):
    """Pick (block_rows, n_pad) so block_rows divides n_pad and n_pad ~= n_rows."""
    n_pad = _round_up(max(n_rows, 1), row_align)
    units = n_pad // row_align

    if gen >= 7:
        # v7x: 64 MiB VMEM, 2 TensorCores -> moderate tiles, >=4 grid steps so
        # each core still double-buffers DMA behind compute.
        tile_budget = 2 << 20
        min_steps = 4
    else:
        # v5e/v6e: single TensorCore, 128 MiB VMEM -> fewer, bigger tiles to
        # amortize the ~0.35us per-grid-step overhead.  (v4 megacore: 2 steps.)
        tile_budget = 4 << 20
        min_steps = 2 if gen == 4 else 1

    rows_budget = max(row_align, tile_budget // max(1, d_pad * itemsize))
    cap_units = max(1, rows_budget // row_align)
    if units >= min_steps:
        cap_units = min(cap_units, max(1, units // min_steps))

    best = _largest_divisor_leq(units, cap_units)
    if best * 4 < min(cap_units, units):
        # Divisor structure of N forces tiny blocks; a few ghost rows are
        # cheaper than 4x+ the fixed per-grid-step overhead.
        block_rows = cap_units * row_align
        return block_rows, _round_up(n_pad, block_rows)
    return best * row_align, n_pad


def _choose_strip_rows(block_rows, d_pad, row_align):
    """Rows per register-resident strip (~16 vregs of f32 z), divides block_rows."""
    target = max(row_align, (_STRIP_BYTES // (d_pad * 4)) // row_align * row_align)
    target = min(target, block_rows)
    t = _largest_divisor_leq(block_rows // row_align, max(1, target // row_align))
    return t * row_align


def sparsemax_pallas(x, dim=-1, block_rows=None):
    dim = dim % x.ndim
    if dim != x.ndim - 1:
        return jnp.moveaxis(
            sparsemax_pallas(jnp.moveaxis(x, dim, -1), dim=-1,
                             block_rows=block_rows),
            -1, dim)
    if x.size == 0:
        return x

    orig_shape = x.shape
    d = orig_shape[-1]
    d_pad = _round_up(d, _LANE)                       # lane-dense last dim
    x2 = x.reshape(-1, d)
    n = x2.shape[0]

    itemsize = jnp.dtype(x.dtype).itemsize
    row_align = max(_SUBLANE, 32 // max(1, itemsize))  # 8 f32 / 16 bf16 / 32 int8
    gen = _tpu_generation()

    if block_rows is None:
        block_rows, n_pad = _choose_block_rows(n, d_pad, row_align, itemsize, gen)
    else:
        block_rows = _round_up(max(block_rows, row_align), row_align)
        n_pad = _round_up(max(n, block_rows), block_rows)
    strip_rows = _choose_strip_rows(block_rows, d_pad, row_align)

    pad_r, pad_c = n_pad - n, d_pad - d
    if pad_r or pad_c:
        # Padded lanes get -inf so they can never enter the support (the kernel
        # needs no lane mask); ghost rows get 0 so no NaN can arise from
        # (-inf) - (-inf) in the row-max subtraction.
        x2 = jnp.pad(x2, ((0, pad_r), (0, pad_c)),
                     constant_values=((0.0, 0.0), (0.0, _NEG_INF)))

    kernel = functools.partial(_sparsemax_kernel, n_iters=_N_BISECT,
                               strip_rows=strip_rows)
    cost = pl.CostEstimate(
        flops=int((3 * _N_BISECT + 12) * n_pad * d_pad),
        transcendentals=0,
        bytes_accessed=int(2 * n_pad * d_pad * itemsize))

    tile_bytes = block_rows * d_pad * itemsize
    # TODO(synk): a D-chunked bisection (partial f sums per D chunk) would be
    # needed for the huge-D corner where even an 8-row tile overflows VMEM.
    need = 5 * tile_bytes + (8 << 20)
    vmem_limit = (min(max(32 << 20, need), 48 << 20) if gen >= 7
                  else min(max(48 << 20, need), 100 << 20))

    out = pl.pallas_call(
        kernel,
        out_shape=jax.ShapeDtypeStruct((n_pad, d_pad), x.dtype),
        grid_spec=pltpu.PrefetchScalarGridSpec(
            num_scalar_prefetch=0,
            grid=(n_pad // block_rows,),
            in_specs=[pl.BlockSpec((block_rows, d_pad), lambda i: (i, 0))],
            out_specs=pl.BlockSpec((block_rows, d_pad), lambda i: (i, 0)),
        ),
        compiler_params=pltpu.CompilerParams(
            dimension_semantics=("parallel",),
            vmem_limit_bytes=int(vmem_limit)),
        cost_estimate=cost,
    )(x2)

    if pad_r or pad_c:
        out = out[:n, :d]
    return out.reshape(orig_shape)


class Sparsemax:
    """Drop-in analogue of the PyTorch Sparsemax module (forward only)."""
    # TODO(synk): SparsemaxFunction.backward (autograd) is not implemented here.

    def __init__(self, dim=-1):
        self.dim = dim

    def __call__(self, x):
        return sparsemax_pallas(x, dim=self.dim)


def _sparsemax_ref(x):
    # Pure-JAX reference mirroring SparsemaxFunction.forward (sort-based).
    z = x - jnp.max(x, axis=-1, keepdims=True)
    z_srt = jnp.flip(jnp.sort(z, axis=-1), axis=-1)
    cs = jnp.cumsum(z_srt, axis=-1) - 1.0
    d = z.shape[-1]
    rhos = jnp.arange(1, d + 1, dtype=z.dtype)
    support = rhos * z_srt > cs
    k = jnp.sum(support, axis=-1, keepdims=True)
    tau = jnp.take_along_axis(cs, k - 1, axis=-1) / k.astype(z.dtype)
    return jnp.clip(z - tau, 0.0, None)


if __name__ == "__main__":
    mod = Sparsemax(dim=-1)

    # Small shape matching the module's typical use (batch=2, seq=8, hidden=32).
    x = jax.random.normal(jax.random.PRNGKey(0), (2, 8, 32), dtype=jnp.float32)
    out = jax.block_until_ready(mod(x))
    ref = _sparsemax_ref(x)
    assert out.shape == x.shape and out.dtype == x.dtype
    assert jnp.allclose(out, ref, atol=1e-5), "mismatch vs reference sparsemax"
    assert jnp.allclose(jnp.sum(out, axis=-1), 1.0, atol=1e-5)

    # Lane-dense, multi-strip shape exercising the tiled / strip-loop path.
    x2 = jax.random.normal(jax.random.PRNGKey(1), (4, 128, 256), dtype=jnp.float32)
    out2 = jax.block_until_ready(mod(x2))
    assert jnp.allclose(out2, _sparsemax_ref(x2), atol=1e-5), "mismatch on large shape"
    assert jnp.allclose(jnp.sum(out2, axis=-1), 1.0, atol=1e-5)

    # Row count not a multiple of the sublane: exercises ghost rows and the
    # host-side -inf lane padding.
    x3 = jax.random.normal(jax.random.PRNGKey(2), (3, 7, 32), dtype=jnp.float32)
    out3 = jax.block_until_ready(mod(x3))
    assert jnp.allclose(out3, _sparsemax_ref(x3), atol=1e-5), "mismatch on ragged shape"
    assert jnp.allclose(jnp.sum(out3, axis=-1), 1.0, atol=1e-5)

    print("KERNEL_OK")
</pallas_src>

<mosaic_0001>
module attributes {stable_mosaic.version = 11 : i64} {
  func.func @_sparsemax_kernel(%arg0: i32, %arg1: memref<16x128xf32, #tpu.memory_space<vmem>>, %arg2: memref<16x128xf32, #tpu.memory_space<vmem>>) attributes {dimension_semantics = [#tpu.dimension_semantics<parallel>], iteration_bounds = array<i64: 1>, scalar_prefetch = 0 : i64, scratch_operands = 0 : i64, tpu.core_type = #tpu.core_type<tc>, window_params = [{transform_indices = @transform_0, window_bounds = array<i64: 16, 128>}, {transform_indices = @transform_1, window_bounds = array<i64: 16, 128>}]} {
    %c0 = arith.constant 0 : index
    %c0_0 = arith.constant 0 : index
    %0 = vector.load %arg1[%c0, %c0_0] : memref<16x128xf32, #tpu.memory_space<vmem>>, vector<16x128xf32>
    %cst = arith.constant dense<0xFF800000> : vector<16xf32>
    %1 = vector.multi_reduction <maximumf>, %0, %cst [1] : vector<16x128xf32> to vector<16xf32>
    %2 = vector.shape_cast %1 : vector<16xf32> to vector<16x1xf32>
    %3 = vector.broadcast %2 : vector<16x1xf32> to vector<16x128xf32>
    %4 = arith.subf %0, %3 : vector<16x128xf32>
    %cst_1 = arith.constant -1.000000e+00 : f32
    %5 = vector.broadcast %cst_1 : f32 to vector<16x1xf32>
    %cst_2 = arith.constant 0.000000e+00 : f32
    %6 = vector.broadcast %cst_2 : f32 to vector<16x1xf32>
    %c0_i32 = arith.constant 0 : i32
    %7 = arith.addf %5, %6 : vector<16x1xf32>
    %cst_3 = arith.constant 5.000000e-01 : f32
    %8 = vector.broadcast %cst_3 : f32 to vector<16x1xf32>
    %9 = arith.mulf %8, %7 : vector<16x1xf32>
    %10 = vector.broadcast %9 : vector<16x1xf32> to vector<16x128xf32>
    %11 = arith.subf %4, %10 : vector<16x128xf32>
    %cst_4 = arith.constant 0.000000e+00 : f32
    %12 = vector.broadcast %cst_4 : f32 to vector<16x128xf32>
    %13 = arith.maximumf %11, %12 : vector<16x128xf32>
    %cst_5 = arith.constant dense<0.000000e+00> : vector<16xf32>
    %14 = vector.multi_reduction <add>, %13, %cst_5 [1] : vector<16x128xf32> to vector<16xf32>
    %15 = vector.shape_cast %14 : vector<16xf32> to vector<16x1xf32>
    %cst_6 = arith.constant 1.000000e+00 : f32
    %16 = vector.broadcast %cst_6 : f32 to vector<16x1xf32>
    %17 = arith.subf %15, %16 : vector<16x1xf32>
    %cst_7 = arith.constant 0.000000e+00 : f32
    %18 = vector.broadcast %cst_7 : f32 to vector<16x1xf32>
    %19 = arith.cmpf ogt, %17, %18 : vector<16x1xf32>
    %20 = arith.select %19, %9, %5 : vector<16x1xi1>, vector<16x1xf32>
    %21 = arith.select %19, %6, %9 : vector<16x1xi1>, vector<16x1xf32>
    %c1_i32 = arith.constant 1 : i32
    %22 = arith.addf %20, %21 : vector<16x1xf32>
    %cst_8 = arith.constant 5.000000e-01 : f32
    %23 = vector.broadcast %cst_8 : f32 to vector<16x1xf32>
    %24 = arith.mulf %23, %22 : vector<16x1xf32>
    %25 = vector.broadcast %24 : vector<16x1xf32> to vector<16x128xf32>
    %26 = arith.subf %4, %25 : vector<16x128xf32>
    %cst_9 = arith.constant 0.000000e+00 : f32
    %27 = vector.broadcast %cst_9 : f32 to vector<16x128xf32>
    %28 = arith.maximumf %26, %27 : vector<16x128xf32>
    %cst_10 = arith.constant dense<0.000000e+00> : vector<16xf32>
    %29 = vector.multi_reduction <add>, %28, %cst_10 [1] : vector<16x128xf32> to vector<16xf32>
    %30 = vector.shape_cast %29 : vector<16xf32> to vector<16x1xf32>
    %cst_11 = arith.constant 1.000000e+00 : f32
    %31 = vector.broadcast %cst_11 : f32 to vector<16x1xf32>
    %32 = arith.subf %30, %31 : vector<16x1xf32>
    %cst_12 = arith.constant 0.000000e+00 : f32
    %33 = vector.broadcast %cst_12 : f32 to vector<16x1xf32>
    %34 = arith.cmpf ogt, %32, %33 : vector<16x1xf32>
    %35 = arith.select %34, %24, %20 : vector<16x1xi1>, vector<16x1xf32>
    %36 = arith.select %34, %21, %24 : vector<16x1xi1>, vector<16x1xf32>
    %c2_i32 = arith.constant 2 : i32
    %37 = arith.addf %35, %36 : vector<16x1xf32>
    %cst_13 = arith.constant 5.000000e-01 : f32
    %38 = vector.broadcast %cst_13 : f32 to vector<16x1xf32>
    %39 = arith.mulf %38, %37 : vector<16x1xf32>
    %40 = vector.broadcast %39 : vector<16x1xf32> to vector<16x128xf32>
    %41 = arith.subf %4, %40 : vector<16x128xf32>
    %cst_14 = arith.constant 0.000000e+00 : f32
    %42 = vector.broadcast %cst_14 : f32 to vector<16x128xf32>
    %43 = arith.maximumf %41, %42 : vector<16x128xf32>
    %cst_15 = arith.constant dense<0.000000e+00> : vector<16xf32>
    %44 = vector.multi_reduction <add>, %43, %cst_15 [1] : vector<16x128xf32> to vector<16xf32>
    %45 = vector.shape_cast %44 : vector<16xf32> to vector<16x1xf32>
    %cst_16 = arith.constant 1.000000e+00 : f32
    %46 = vector.broadcast %cst_16 : f32 to vector<16x1xf32>
    %47 = arith.subf %45, %46 : vector<16x1xf32>
    %cst_17 = arith.constant 0.000000e+00 : f32
    %48 = vector.broadcast %cst_17 : f32 to vector<16x1xf32>
    %49 = arith.cmpf ogt, %47, %48 : vector<16x1xf32>
    %50 = arith.select %49, %39, %35 : vector<16x1xi1>, vector<16x1xf32>
    %51 = arith.select %49, %36, %39 : vector<16x1xi1>, vector<16x1xf32>
    %c3_i32 = arith.constant 3 : i32
    %52 = arith.addf %50, %51 : vector<16x1xf32>
    %cst_18 = arith.constant 5.000000e-01 : f32
    %53 = vector.broadcast %cst_18 : f32 to vector<16x1xf32>
    %54 = arith.mulf %53, %52 : vector<16x1xf32>
    %55 = vector.broadcast %54 : vector<16x1xf32> to vector<16x128xf32>
    %56 = arith.subf %4, %55 : vector<16x128xf32>
    %cst_19 = arith.constant 0.000000e+00 : f32
    %57 = vector.broadcast %cst_19 : f32 to vector<16x128xf32>
    %58 = arith.maximumf %56, %57 : vector<16x128xf32>
    %cst_20 = arith.constant dense<0.000000e+00> : vector<16xf32>
    %59 = vector.multi_reduction <add>, %58, %cst_20 [1] : vector<16x128xf32> to vector<16xf32>
    %60 = vector.shape_cast %59 : vector<16xf32> to vector<16x1xf32>
    %cst_21 = arith.constant 1.000000e+00 : f32
    %61 = vector.broadcast %cst_21 : f32 to vector<16x1xf32>
    %62 = arith.subf %60, %61 : vector<16x1xf32>
    %cst_22 = arith.constant 0.000000e+00 : f32
    %63 = vector.broadcast %cst_22 : f32 to vector<16x1xf32>
    %64 = arith.cmpf ogt, %62, %63 : vector<16x1xf32>
    %65 = arith.select %64, %54, %50 : vector<16x1xi1>, vector<16x1xf32>
    %66 = arith.select %64, %51, %54 : vector<16x1xi1>, vector<16x1xf32>
    %c4_i32 = arith.constant 4 : i32
    %67 = arith.addf %65, %66 : vector<16x1xf32>
    %cst_23 = arith.constant 5.000000e-01 : f32
    %68 = vector.broadcast %cst_23 : f32 to vector<16x1xf32>
    %69 = arith.mulf %68, %67 : vector<16x1xf32>
    %70 = vector.broadcast %69 : vector<16x1xf32> to vector<16x128xf32>
    %71 = arith.subf %4, %70 : vector<16x128xf32>
    %cst_24 = arith.constant 0.000000e+00 : f32
    %72 = vector.broadcast %cst_24 : f32 to vector<16x128xf32>
    %73 = arith.maximumf %71, %72 : vector<16x128xf32>
    %cst_25 = arith.constant dense<0.000000e+00> : vector<16xf32>
    %74 = vector.multi_reduction <add>, %73, %cst_25 [1] : vector<16x128xf32> to vector<16xf32>
    %75 = vector.shape_cast %74 : vector<16xf32> to vector<16x1xf32>
    %cst_26 = arith.constant 1.000000e+00 : f32
    %76 = vector.broadcast %cst_26 : f32 to vector<16x1xf32>
    %77 = arith.subf %75, %76 : vector<16x1xf32>
    %cst_27 = arith.constant 0.000000e+00 : f32
    %78 = vector.broadcast %cst_27 : f32 to vector<16x1xf32>
    %79 = arith.cmpf ogt, %77, %78 : vector<16x1xf32>
    %80 = arith.select %79, %69, %65 : vector<16x1xi1>, vector<16x1xf32>
    %81 = arith.select %79, %66, %69 : vector<16x1xi1>, vector<16x1xf32>
    %c5_i32 = arith.constant 5 : i32
    %82 = arith.addf %80, %81 : vector<16x1xf32>
    %cst_28 = arith.constant 5.000000e-01 : f32
    %83 = vector.broadcast %cst_28 : f32 to vector<16x1xf32>
    %84 = arith.mulf %83, %82 : vector<16x1xf32>
    %85 = vector.broadcast %84 : vector<16x1xf32> to vector<16x128xf32>
    %86 = arith.subf %4, %85 : vector<16x128xf32>
    %cst_29 = arith.constant 0.000000e+00 : f32
    %87 = vector.broadcast %cst_29 : f32 to vector<16x128xf32>
    %88 = arith.maximumf %86, %87 : vector<16x128xf32>
    %cst_30 = arith.constant dense<0.000000e+00> : vector<16xf32>
    %89 = vector.multi_reduction <add>, %88, %cst_30 [1] : vector<16x128xf32> to vector<16xf32>
    %90 = vector.shape_cast %89 : vector<16xf32> to vector<16x1xf32>
    %cst_31 = arith.constant 1.000000e+00 : f32
    %91 = vector.broadcast %cst_31 : f32 to vector<16x1xf32>
    %92 = arith.subf %90, %91 : vector<16x1xf32>
    %cst_32 = arith.constant 0.000000e+00 : f32
    %93 = vector.broadcast %cst_32 : f32 to vector<16x1xf32>
    %94 = arith.cmpf ogt, %92, %93 : vector<16x1xf32>
    %95 = arith.select %94, %84, %80 : vector<16x1xi1>, vector<16x1xf32>
    %96 = arith.select %94, %81, %84 : vector<16x1xi1>, vector<16x1xf32>
    %c6_i32 = arith.constant 6 : i32
    %97 = arith.addf %95, %96 : vector<16x1xf32>
    %cst_33 = arith.constant 5.000000e-01 : f32
    %98 = vector.broadcast %cst_33 : f32 to vector<16x1xf32>
    %99 = arith.mulf %98, %97 : vector<16x1xf32>
    %100 = vector.broadcast %99 : vector<16x1xf32> to vector<16x128xf32>
    %101 = arith.subf %4, %100 : vector<16x128xf32>
    %cst_34 = arith.constant 0.000000e+00 : f32
    %102 = vector.broadcast %cst_34 : f32 to vector<16x128xf32>
    %103 = arith.maximumf %101, %102 : vector<16x128xf32>
    %cst_35 = arith.constant dense<0.000000e+00> : vector<16xf32>
    %104 = vector.multi_reduction <add>, %103, %cst_35 [1] : vector<16x128xf32> to vector<16xf32>
    %105 = vector.shape_cast %104 : vector<16xf32> to vector<16x1xf32>
    %cst_36 = arith.constant 1.000000e+00 : f32
    %106 = vector.broadcast %cst_36 : f32 to vector<16x1xf32>
    %107 = arith.subf %105, %106 : vector<16x1xf32>
    %cst_37 = arith.constant 0.000000e+00 : f32
    %108 = vector.broadcast %cst_37 : f32 to vector<16x1xf32>
    %109 = arith.cmpf ogt, %107, %108 : vector<16x1xf32>
    %110 = arith.select %109, %99, %95 : vector<16x1xi1>, vector<16x1xf32>
    %111 = arith.select %109, %96, %99 : vector<16x1xi1>, vector<16x1xf32>
    %c7_i32 = arith.constant 7 : i32
    %112 = arith.addf %110, %111 : vector<16x1xf32>
    %cst_38 = arith.constant 5.000000e-01 : f32
    %113 = vector.broadcast %cst_38 : f32 to vector<16x1xf32>
    %114 = arith.mulf %113, %112 : vector<16x1xf32>
    %115 = vector.broadcast %114 : vector<16x1xf32> to vector<16x128xf32>
    %116 = arith.subf %4, %115 : vector<16x128xf32>
    %cst_39 = arith.constant 0.000000e+00 : f32
    %117 = vector.broadcast %cst_39 : f32 to vector<16x128xf32>
    %118 = arith.maximumf %116, %117 : vector<16x128xf32>
    %cst_40 = arith.constant dense<0.000000e+00> : vector<16xf32>
    %119 = vector.multi_reduction <add>, %118, %cst_40 [1] : vector<16x128xf32> to vector<16xf32>
    %120 = vector.shape_cast %119 : vector<16xf32> to vector<16x1xf32>
    %cst_41 = arith.constant 1.000000e+00 : f32
    %121 = vector.broadcast %cst_41 : f32 to vector<16x1xf32>
    %122 = arith.subf %120, %121 : vector<16x1xf32>
    %cst_42 = arith.constant 0.000000e+00 : f32
    %123 = vector.broadcast %cst_42 : f32 to vector<16x1xf32>
    %124 = arith.cmpf ogt, %122, %123 : vector<16x1xf32>
    %125 = arith.select %124, %114, %110 : vector<16x1xi1>, vector<16x1xf32>
    %126 = arith.select %124, %111, %114 : vector<16x1xi1>, vector<16x1xf32>
    %c8_i32 = arith.constant 8 : i32
    %127 = arith.addf %125, %126 : vector<16x1xf32>
    %cst_43 = arith.constant 5.000000e-01 : f32
    %128 = vector.broadcast %cst_43 : f32 to vector<16x1xf32>
    %129 = arith.mulf %128, %127 : vector<16x1xf32>
    %130 = vector.broadcast %129 : vector<16x1xf32> to vector<16x128xf32>
    %131 = arith.subf %4, %130 : vector<16x128xf32>
    %cst_44 = arith.constant 0.000000e+00 : f32
    %132 = vector.broadcast %cst_44 : f32 to vector<16x128xf32>
    %133 = arith.maximumf %131, %132 : vector<16x128xf32>
    %cst_45 = arith.constant dense<0.000000e+00> : vector<16xf32>
    %134 = vector.multi_reduction <add>, %133, %cst_45 [1] : vector<16x128xf32> to vector<16xf32>
    %135 = vector.shape_cast %134 : vector<16xf32> to vector<16x1xf32>
    %cst_46 = arith.constant 1.000000e+00 : f32
    %136 = vector.broadcast %cst_46 : f32 to vector<16x1xf32>
    %137 = arith.subf %135, %136 : vector<16x1xf32>
    %cst_47 = arith.constant 0.000000e+00 : f32
    %138 = vector.broadcast %cst_47 : f32 to vector<16x1xf32>
    %139 = arith.cmpf ogt, %137, %138 : vector<16x1xf32>
    %140 = arith.select %139, %129, %125 : vector<16x1xi1>, vector<16x1xf32>
    %141 = arith.select %139, %126, %129 : vector<16x1xi1>, vector<16x1xf32>
    %c9_i32 = arith.constant 9 : i32
    %142 = arith.addf %140, %141 : vector<16x1xf32>
    %cst_48 = arith.constant 5.000000e-01 : f32
    %143 = vector.broadcast %cst_48 : f32 to vector<16x1xf32>
    %144 = arith.mulf %143, %142 : vector<16x1xf32>
    %145 = vector.broadcast %144 : vector<16x1xf32> to vector<16x128xf32>
    %146 = arith.subf %4, %145 : vector<16x128xf32>
    %cst_49 = arith.constant 0.000000e+00 : f32
    %147 = vector.broadcast %cst_49 : f32 to vector<16x128xf32>
    %148 = arith.maximumf %146, %147 : vector<16x128xf32>
    %cst_50 = arith.constant dense<0.000000e+00> : vector<16xf32>
    %149 = vector.multi_reduction <add>, %148, %cst_50 [1] : vector<16x128xf32> to vector<16xf32>
    %150 = vector.shape_cast %149 : vector<16xf32> to vector<16x1xf32>
    %cst_51 = arith.constant 1.000000e+00 : f32
    %151 = vector.broadcast %cst_51 : f32 to vector<16x1xf32>
    %152 = arith.subf %150, %151 : vector<16x1xf32>
    %cst_52 = arith.constant 0.000000e+00 : f32
    %153 = vector.broadcast %cst_52 : f32 to vector<16x1xf32>
    %154 = arith.cmpf ogt, %152, %153 : vector<16x1xf32>
    %155 = arith.select %154, %144, %140 : vector<16x1xi1>, vector<16x1xf32>
    %156 = arith.select %154, %141, %144 : vector<16x1xi1>, vector<16x1xf32>
    %c10_i32 = arith.constant 10 : i32
    %157 = arith.addf %155, %156 : vector<16x1xf32>
    %cst_53 = arith.constant 5.000000e-01 : f32
    %158 = vector.broadcast %cst_53 : f32 to vector<16x1xf32>
    %159 = arith.mulf %158, %157 : vector<16x1xf32>
    %160 = vector.broadcast %159 : vector<16x1xf32> to vector<16x128xf32>
    %161 = arith.subf %4, %160 : vector<16x128xf32>
    %cst_54 = arith.constant 0.000000e+00 : f32
    %162 = vector.broadcast %cst_54 : f32 to vector<16x128xf32>
    %163 = arith.maximumf %161, %162 : vector<16x128xf32>
    %cst_55 = arith.constant dense<0.000000e+00> : vector<16xf32>
    %164 = vector.multi_reduction <add>, %163, %cst_55 [1] : vector<16x128xf32> to vector<16xf32>
    %165 = vector.shape_cast %164 : vector<16xf32> to vector<16x1xf32>
    %cst_56 = arith.constant 1.000000e+00 : f32
    %166 = vector.broadcast %cst_56 : f32 to vector<16x1xf32>
    %167 = arith.subf %165, %166 : vector<16x1xf32>
    %cst_57 = arith.constant 0.000000e+00 : f32
    %168 = vector.broadcast %cst_57 : f32 to vector<16x1xf32>
    %169 = arith.cmpf ogt, %167, %168 : vector<16x1xf32>
    %170 = arith.select %169, %159, %155 : vector<16x1xi1>, vector<16x1xf32>
    %171 = arith.select %169, %156, %159 : vector<16x1xi1>, vector<16x1xf32>
    %c11_i32 = arith.constant 11 : i32
    %172 = arith.addf %170, %171 : vector<16x1xf32>
    %cst_58 = arith.constant 5.000000e-01 : f32
    %173 = vector.broadcast %cst_58 : f32 to vector<16x1xf32>
    %174 = arith.mulf %173, %172 : vector<16x1xf32>
    %175 = vector.broadcast %174 : vector<16x1xf32> to vector<16x128xf32>
    %176 = arith.subf %4, %175 : vector<16x128xf32>
    %cst_59 = arith.constant 0.000000e+00 : f32
    %177 = vector.broadcast %cst_59 : f32 to vector<16x128xf32>
    %178 = arith.maximumf %176, %177 : vector<16x128xf32>
    %cst_60 = arith.constant dense<0.000000e+00> : vector<16xf32>
    %179 = vector.multi_reduction <add>, %178, %cst_60 [1] : vector<16x128xf32> to vector<16xf32>
    %180 = vector.shape_cast %179 : vector<16xf32> to vector<16x1xf32>
    %cst_61 = arith.constant 1.000000e+00 : f32
    %181 = vector.broadcast %cst_61 : f32 to vector<16x1xf32>
    %182 = arith.subf %180, %181 : vector<16x1xf32>
    %cst_62 = arith.constant 0.000000e+00 : f32
    %183 = vector.broadcast %cst_62 : f32 to vector<16x1xf32>
    %184 = arith.cmpf ogt, %182, %183 : vector<16x1xf32>
    %185 = arith.select %184, %174, %170 : vector<16x1xi1>, vector<16x1xf32>
    %186 = arith.select %184, %171, %174 : vector<16x1xi1>, vector<16x1xf32>
    %c12_i32 = arith.constant 12 : i32
    %187 = arith.addf %185, %186 : vector<16x1xf32>
    %cst_63 = arith.constant 5.000000e-01 : f32
    %188 = vector.broadcast %cst_63 : f32 to vector<16x1xf32>
    %189 = arith.mulf %188, %187 : vector<16x1xf32>
    %190 = vector.broadcast %189 : vector<16x1xf32> to vector<16x128xf32>
    %191 = arith.subf %4, %190 : vector<16x128xf32>
    %cst_64 = arith.constant 0.000000e+00 : f32
    %192 = vector.broadcast %cst_64 : f32 to vector<16x128xf32>
    %193 = arith.maximumf %191, %192 : vector<16x128xf32>
    %cst_65 = arith.constant dense<0.000000e+00> : vector<16xf32>
    %194 = vector.multi_reduction <add>, %193, %cst_65 [1] : vector<16x128xf32> to vector<16xf32>
    %195 = vector.shape_cast %194 : vector<16xf32> to vector<16x1xf32>
    %cst_66 = arith.constant 1.000000e+00 : f32
    %196 = vector.broadcast %cst_66 : f32 to vector<16x1xf32>
    %197 = arith.subf %195, %196 : vector<16x1xf32>
    %cst_67 = arith.constant 0.000000e+00 : f32
    %198 = vector.broadcast %cst_67 : f32 to vector<16x1xf32>
    %199 = arith.cmpf ogt, %197, %198 : vector<16x1xf32>
    %200 = arith.select %199, %189, %185 : vector<16x1xi1>, vector<16x1xf32>
    %201 = arith.select %199, %186, %189 : vector<16x1xi1>, vector<16x1xf32>
    %c13_i32 = arith.constant 13 : i32
    %202 = arith.addf %200, %201 : vector<16x1xf32>
    %cst_68 = arith.constant 5.000000e-01 : f32
    %203 = vector.broadcast %cst_68 : f32 to vector<16x1xf32>
    %204 = arith.mulf %203, %202 : vector<16x1xf32>
    %205 = vector.broadcast %204 : vector<16x1xf32> to vector<16x128xf32>
    %206 = arith.subf %4, %205 : vector<16x128xf32>
    %cst_69 = arith.constant 0.000000e+00 : f32
    %207 = vector.broadcast %cst_69 : f32 to vector<16x128xf32>
    %208 = arith.maximumf %206, %207 : vector<16x128xf32>
    %cst_70 = arith.constant dense<0.000000e+00> : vector<16xf32>
    %209 = vector.multi_reduction <add>, %208, %cst_70 [1] : vector<16x128xf32> to vector<16xf32>
    %210 = vector.shape_cast %209 : vector<16xf32> to vector<16x1xf32>
    %cst_71 = arith.constant 1.000000e+00 : f32
    %211 = vector.broadcast %cst_71 : f32 to vector<16x1xf32>
    %212 = arith.subf %210, %211 : vector<16x1xf32>
    %cst_72 = arith.constant 0.000000e+00 : f32
    %213 = vector.broadcast %cst_72 : f32 to vector<16x1xf32>
    %214 = arith.cmpf ogt, %212, %213 : vector<16x1xf32>
    %215 = arith.select %214, %204, %200 : vector<16x1xi1>, vector<16x1xf32>
    %216 = arith.select %214, %201, %204 : vector<16x1xi1>, vector<16x1xf32>
    %c14_i32 = arith.constant 14 : i32
    %217 = arith.addf %215, %216 : vector<16x1xf32>
    %cst_73 = arith.constant 5.000000e-01 : f32
    %218 = vector.broadcast %cst_73 : f32 to vector<16x1xf32>
    %219 = arith.mulf %218, %217 : vector<16x1xf32>
    %220 = vector.broadcast %219 : vector<16x1xf32> to vector<16x128xf32>
    %221 = arith.subf %4, %220 : vector<16x128xf32>
    %cst_74 = arith.constant 0.000000e+00 : f32
    %222 = vector.broadcast %cst_74 : f32 to vector<16x128xf32>
    %223 = arith.maximumf %221, %222 : vector<16x128xf32>
    %cst_75 = arith.constant dense<0.000000e+00> : vector<16xf32>
    %224 = vector.multi_reduction <add>, %223, %cst_75 [1] : vector<16x128xf32> to vector<16xf32>
    %225 = vector.shape_cast %224 : vector<16xf32> to vector<16x1xf32>
    %cst_76 = arith.constant 1.000000e+00 : f32
    %226 = vector.broadcast %cst_76 : f32 to vector<16x1xf32>
    %227 = arith.subf %225, %226 : vector<16x1xf32>
    %cst_77 = arith.constant 0.000000e+00 : f32
    %228 = vector.broadcast %cst_77 : f32 to vector<16x1xf32>
    %229 = arith.cmpf ogt, %227, %228 : vector<16x1xf32>
    %230 = arith.select %229, %219, %215 : vector<16x1xi1>, vector<16x1xf32>
    %231 = arith.select %229, %216, %219 : vector<16x1xi1>, vector<16x1xf32>
    %c15_i32 = arith.constant 15 : i32
    %232 = arith.addf %230, %231 : vector<16x1xf32>
    %cst_78 = arith.constant 5.000000e-01 : f32
    %233 = vector.broadcast %cst_78 : f32 to vector<16x1xf32>
    %234 = arith.mulf %233, %232 : vector<16x1xf32>
    %235 = vector.broadcast %234 : vector<16x1xf32> to vector<16x128xf32>
    %236 = arith.subf %4, %235 : vector<16x128xf32>
    %cst_79 = arith.constant 0.000000e+00 : f32
    %237 = vector.broadcast %cst_79 : f32 to vector<16x128xf32>
    %238 = arith.maximumf %236, %237 : vector<16x128xf32>
    %cst_80 = arith.constant dense<0.000000e+00> : vector<16xf32>
    %239 = vector.multi_reduction <add>, %238, %cst_80 [1] : vector<16x128xf32> to vector<16xf32>
    %240 = vector.shape_cast %239 : vector<16xf32> to vector<16x1xf32>
    %cst_81 = arith.constant 1.000000e+00 : f32
    %241 = vector.broadcast %cst_81 : f32 to vector<16x1xf32>
    %242 = arith.subf %240, %241 : vector<16x1xf32>
    %cst_82 = arith.constant 0.000000e+00 : f32
    %243 = vector.broadcast %cst_82 : f32 to vector<16x1xf32>
    %244 = arith.cmpf ogt, %242, %243 : vector<16x1xf32>
    %245 = arith.select %244, %234, %230 : vector<16x1xi1>, vector<16x1xf32>
    %246 = arith.select %244, %231, %234 : vector<16x1xi1>, vector<16x1xf32>
    %c16_i32 = arith.constant 16 : i32
    %247 = arith.addf %245, %246 : vector<16x1xf32>
    %cst_83 = arith.constant 5.000000e-01 : f32
    %248 = vector.broadcast %cst_83 : f32 to vector<16x1xf32>
    %249 = arith.mulf %248, %247 : vector<16x1xf32>
    %250 = vector.broadcast %249 : vector<16x1xf32> to vector<16x128xf32>
    %251 = arith.subf %4, %250 : vector<16x128xf32>
    %cst_84 = arith.constant 0.000000e+00 : f32
    %252 = vector.broadcast %cst_84 : f32 to vector<16x128xf32>
    %253 = arith.maximumf %251, %252 : vector<16x128xf32>
    %cst_85 = arith.constant dense<0.000000e+00> : vector<16xf32>
    %254 = vector.multi_reduction <add>, %253, %cst_85 [1] : vector<16x128xf32> to vector<16xf32>
    %255 = vector.shape_cast %254 : vector<16xf32> to vector<16x1xf32>
    %cst_86 = arith.constant 1.000000e+00 : f32
    %256 = vector.broadcast %cst_86 : f32 to vector<16x1xf32>
    %257 = arith.subf %255, %256 : vector<16x1xf32>
    %cst_87 = arith.constant 0.000000e+00 : f32
    %258 = vector.broadcast %cst_87 : f32 to vector<16x1xf32>
    %259 = arith.cmpf ogt, %257, %258 : vector<16x1xf32>
    %260 = arith.select %259, %249, %245 : vector<16x1xi1>, vector<16x1xf32>
    %261 = arith.select %259, %246, %249 : vector<16x1xi1>, vector<16x1xf32>
    %c17_i32 = arith.constant 17 : i32
    %262 = arith.addf %260, %261 : vector<16x1xf32>
    %cst_88 = arith.constant 5.000000e-01 : f32
    %263 = vector.broadcast %cst_88 : f32 to vector<16x1xf32>
    %264 = arith.mulf %263, %262 : vector<16x1xf32>
    %265 = vector.broadcast %264 : vector<16x1xf32> to vector<16x128xf32>
    %266 = arith.subf %4, %265 : vector<16x128xf32>
    %cst_89 = arith.constant 0.000000e+00 : f32
    %267 = vector.broadcast %cst_89 : f32 to vector<16x128xf32>
    %268 = arith.maximumf %266, %267 : vector<16x128xf32>
    %cst_90 = arith.constant dense<0.000000e+00> : vector<16xf32>
    %269 = vector.multi_reduction <add>, %268, %cst_90 [1] : vector<16x128xf32> to vector<16xf32>
    %270 = vector.shape_cast %269 : vector<16xf32> to vector<16x1xf32>
    %cst_91 = arith.constant 1.000000e+00 : f32
    %271 = vector.broadcast %cst_91 : f32 to vector<16x1xf32>
    %272 = arith.subf %270, %271 : vector<16x1xf32>
    %cst_92 = arith.constant 0.000000e+00 : f32
    %273 = vector.broadcast %cst_92 : f32 to vector<16x1xf32>
    %274 = arith.cmpf ogt, %272, %273 : vector<16x1xf32>
    %275 = arith.select %274, %264, %260 : vector<16x1xi1>, vector<16x1xf32>
    %276 = arith.select %274, %261, %264 : vector<16x1xi1>, vector<16x1xf32>
    %c18_i32 = arith.constant 18 : i32
    %277 = arith.addf %275, %276 : vector<16x1xf32>
    %cst_93 = arith.constant 5.000000e-01 : f32
    %278 = vector.broadcast %cst_93 : f32 to vector<16x1xf32>
    %279 = arith.mulf %278, %277 : vector<16x1xf32>
    %280 = vector.broadcast %279 : vector<16x1xf32> to vector<16x128xf32>
    %281 = arith.subf %4, %280 : vector<16x128xf32>
    %cst_94 = arith.constant 0.000000e+00 : f32
    %282 = vector.broadcast %cst_94 : f32 to vector<16x128xf32>
    %283 = arith.maximumf %281, %282 : vector<16x128xf32>
    %cst_95 = arith.constant dense<0.000000e+00> : vector<16xf32>
    %284 = vector.multi_reduction <add>, %283, %cst_95 [1] : vector<16x128xf32> to vector<16xf32>
    %285 = vector.shape_cast %284 : vector<16xf32> to vector<16x1xf32>
    %cst_96 = arith.constant 1.000000e+00 : f32
    %286 = vector.broadcast %cst_96 : f32 to vector<16x1xf32>
    %287 = arith.subf %285, %286 : vector<16x1xf32>
    %cst_97 = arith.constant 0.000000e+00 : f32
    %288 = vector.broadcast %cst_97 : f32 to vector<16x1xf32>
    %289 = arith.cmpf ogt, %287, %288 : vector<16x1xf32>
    %290 = arith.select %289, %279, %275 : vector<16x1xi1>, vector<16x1xf32>
    %291 = arith.select %289, %276, %279 : vector<16x1xi1>, vector<16x1xf32>
    %c19_i32 = arith.constant 19 : i32
    %292 = arith.addf %290, %291 : vector<16x1xf32>
    %cst_98 = arith.constant 5.000000e-01 : f32
    %293 = vector.broadcast %cst_98 : f32 to vector<16x1xf32>
    %294 = arith.mulf %293, %292 : vector<16x1xf32>
    %295 = vector.broadcast %294 : vector<16x1xf32> to vector<16x128xf32>
    %296 = arith.subf %4, %295 : vector<16x128xf32>
    %cst_99 = arith.constant 0.000000e+00 : f32
    %297 = vector.broadcast %cst_99 : f32 to vector<16x128xf32>
    %298 = arith.maximumf %296, %297 : vector<16x128xf32>
    %cst_100 = arith.constant dense<0.000000e+00> : vector<16xf32>
    %299 = vector.multi_reduction <add>, %298, %cst_100 [1] : vector<16x128xf32> to vector<16xf32>
    %300 = vector.shape_cast %299 : vector<16xf32> to vector<16x1xf32>
    %cst_101 = arith.constant 1.000000e+00 : f32
    %301 = vector.broadcast %cst_101 : f32 to vector<16x1xf32>
    %302 = arith.subf %300, %301 : vector<16x1xf32>
    %cst_102 = arith.constant 0.000000e+00 : f32
    %303 = vector.broadcast %cst_102 : f32 to vector<16x1xf32>
    %304 = arith.cmpf ogt, %302, %303 : vector<16x1xf32>
    %305 = arith.select %304, %294, %290 : vector<16x1xi1>, vector<16x1xf32>
    %306 = arith.select %304, %291, %294 : vector<16x1xi1>, vector<16x1xf32>
    %c20_i32 = arith.constant 20 : i32
    %307 = arith.addf %305, %306 : vector<16x1xf32>
    %cst_103 = arith.constant 5.000000e-01 : f32
    %308 = vector.broadcast %cst_103 : f32 to vector<16x1xf32>
    %309 = arith.mulf %308, %307 : vector<16x1xf32>
    %310 = vector.broadcast %309 : vector<16x1xf32> to vector<16x128xf32>
    %311 = arith.subf %4, %310 : vector<16x128xf32>
    %cst_104 = arith.constant 0.000000e+00 : f32
    %312 = vector.broadcast %cst_104 : f32 to vector<16x128xf32>
    %313 = arith.maximumf %311, %312 : vector<16x128xf32>
    %cst_105 = arith.constant dense<0.000000e+00> : vector<16xf32>
    %314 = vector.multi_reduction <add>, %313, %cst_105 [1] : vector<16x128xf32> to vector<16xf32>
    %315 = vector.shape_cast %314 : vector<16xf32> to vector<16x1xf32>
    %cst_106 = arith.constant 1.000000e+00 : f32
    %316 = vector.broadcast %cst_106 : f32 to vector<16x1xf32>
    %317 = arith.subf %315, %316 : vector<16x1xf32>
    %cst_107 = arith.constant 0.000000e+00 : f32
    %318 = vector.broadcast %cst_107 : f32 to vector<16x1xf32>
    %319 = arith.cmpf ogt, %317, %318 : vector<16x1xf32>
    %320 = arith.select %319, %309, %305 : vector<16x1xi1>, vector<16x1xf32>
    %321 = arith.select %319, %306, %309 : vector<16x1xi1>, vector<16x1xf32>
    %c21_i32 = arith.constant 21 : i32
    %322 = arith.addf %320, %321 : vector<16x1xf32>
    %cst_108 = arith.constant 5.000000e-01 : f32
    %323 = vector.broadcast %cst_108 : f32 to vector<16x1xf32>
    %324 = arith.mulf %323, %322 : vector<16x1xf32>
    %325 = vector.broadcast %324 : vector<16x1xf32> to vector<16x128xf32>
    %326 = arith.subf %4, %325 : vector<16x128xf32>
    %cst_109 = arith.constant 0.000000e+00 : f32
    %327 = vector.broadcast %cst_109 : f32 to vector<16x128xf32>
    %328 = arith.maximumf %326, %327 : vector<16x128xf32>
    %cst_110 = arith.constant dense<0.000000e+00> : vector<16xf32>
    %329 = vector.multi_reduction <add>, %328, %cst_110 [1] : vector<16x128xf32> to vector<16xf32>
    %330 = vector.shape_cast %329 : vector<16xf32> to vector<16x1xf32>
    %cst_111 = arith.constant 1.000000e+00 : f32
    %331 = vector.broadcast %cst_111 : f32 to vector<16x1xf32>
    %332 = arith.subf %330, %331 : vector<16x1xf32>
    %cst_112 = arith.constant 0.000000e+00 : f32
    %333 = vector.broadcast %cst_112 : f32 to vector<16x1xf32>
    %334 = arith.cmpf ogt, %332, %333 : vector<16x1xf32>
    %335 = arith.select %334, %324, %320 : vector<16x1xi1>, vector<16x1xf32>
    %336 = arith.select %334, %321, %324 : vector<16x1xi1>, vector<16x1xf32>
    %c22_i32 = arith.constant 22 : i32
    %337 = arith.addf %335, %336 : vector<16x1xf32>
    %cst_113 = arith.constant 5.000000e-01 : f32
    %338 = vector.broadcast %cst_113 : f32 to vector<16x1xf32>
    %339 = arith.mulf %338, %337 : vector<16x1xf32>
    %340 = vector.broadcast %339 : vector<16x1xf32> to vector<16x128xf32>
    %341 = arith.subf %4, %340 : vector<16x128xf32>
    %cst_114 = arith.constant 0.000000e+00 : f32
    %342 = vector.broadcast %cst_114 : f32 to vector<16x128xf32>
    %343 = arith.maximumf %341, %342 : vector<16x128xf32>
    %cst_115 = arith.constant dense<0.000000e+00> : vector<16xf32>
    %344 = vector.multi_reduction <add>, %343, %cst_115 [1] : vector<16x128xf32> to vector<16xf32>
    %345 = vector.shape_cast %344 : vector<16xf32> to vector<16x1xf32>
    %cst_116 = arith.constant 1.000000e+00 : f32
    %346 = vector.broadcast %cst_116 : f32 to vector<16x1xf32>
    %347 = arith.subf %345, %346 : vector<16x1xf32>
    %cst_117 = arith.constant 0.000000e+00 : f32
    %348 = vector.broadcast %cst_117 : f32 to vector<16x1xf32>
    %349 = arith.cmpf ogt, %347, %348 : vector<16x1xf32>
    %350 = arith.select %349, %339, %335 : vector<16x1xi1>, vector<16x1xf32>
    %351 = arith.select %349, %336, %339 : vector<16x1xi1>, vector<16x1xf32>
    %c23_i32 = arith.constant 23 : i32
    %352 = arith.addf %350, %351 : vector<16x1xf32>
    %cst_118 = arith.constant 5.000000e-01 : f32
    %353 = vector.broadcast %cst_118 : f32 to vector<16x1xf32>
    %354 = arith.mulf %353, %352 : vector<16x1xf32>
    %355 = vector.broadcast %354 : vector<16x1xf32> to vector<16x128xf32>
    %356 = arith.subf %4, %355 : vector<16x128xf32>
    %cst_119 = arith.constant 0.000000e+00 : f32
    %357 = vector.broadcast %cst_119 : f32 to vector<16x128xf32>
    %358 = arith.maximumf %356, %357 : vector<16x128xf32>
    %cst_120 = arith.constant dense<0.000000e+00> : vector<16xf32>
    %359 = vector.multi_reduction <add>, %358, %cst_120 [1] : vector<16x128xf32> to vector<16xf32>
    %360 = vector.shape_cast %359 : vector<16xf32> to vector<16x1xf32>
    %cst_121 = arith.constant 1.000000e+00 : f32
    %361 = vector.broadcast %cst_121 : f32 to vector<16x1xf32>
    %362 = arith.subf %360, %361 : vector<16x1xf32>
    %cst_122 = arith.constant 0.000000e+00 : f32
    %363 = vector.broadcast %cst_122 : f32 to vector<16x1xf32>
    %364 = arith.cmpf ogt, %362, %363 : vector<16x1xf32>
    %365 = arith.select %364, %354, %350 : vector<16x1xi1>, vector<16x1xf32>
    %366 = arith.select %364, %351, %354 : vector<16x1xi1>, vector<16x1xf32>
    %367 = arith.addf %365, %366 : vector<16x1xf32>
    %cst_123 = arith.constant 5.000000e-01 : f32
    %368 = vector.broadcast %cst_123 : f32 to vector<16x1xf32>
    %369 = arith.mulf %368, %367 : vector<16x1xf32>
    %370 = vector.broadcast %369 : vector<16x1xf32> to vector<16x128xf32>
    %371 = arith.cmpf ogt, %4, %370 : vector<16x128xf32>
    %372 = arith.extui %371 : vector<16x128xi1> to vector<16x128xi32>
    %373 = arith.sitofp %372 : vector<16x128xi32> to vector<16x128xf32>
    %cst_124 = arith.constant dense<0.000000e+00> : vector<16xf32>
    %374 = vector.multi_reduction <add>, %373, %cst_124 [1] : vector<16x128xf32> to vector<16xf32>
    %375 = vector.shape_cast %374 : vector<16xf32> to vector<16x1xf32>
    %cst_125 = arith.constant 0.000000e+00 : f32
    %376 = vector.broadcast %cst_125 : f32 to vector<16x128xf32>
    %377 = arith.select %371, %4, %376 : vector<16x128xi1>, vector<16x128xf32>
    %cst_126 = arith.constant dense<0.000000e+00> : vector<16xf32>
    %378 = vector.multi_reduction <add>, %377, %cst_126 [1] : vector<16x128xf32> to vector<16xf32>
    %379 = vector.shape_cast %378 : vector<16xf32> to vector<16x1xf32>
    %cst_127 = arith.constant 1.000000e+00 : f32
    %380 = vector.broadcast %cst_127 : f32 to vector<16x1xf32>
    %381 = arith.subf %379, %380 : vector<16x1xf32>
    %382 = arith.divf %381, %375 : vector<16x1xf32>
    %383 = vector.broadcast %382 : vector<16x1xf32> to vector<16x128xf32>
    %384 = arith.subf %4, %383 : vector<16x128xf32>
    %cst_128 = arith.constant 0.000000e+00 : f32
    %385 = vector.broadcast %cst_128 : f32 to vector<16x128xf32>
    %386 = arith.maximumf %384, %385 : vector<16x128xf32>
    %c0_129 = arith.constant 0 : index
    %c0_130 = arith.constant 0 : index
    %387 = vector.load %arg2[%c0_129, %c0_130] : memref<16x128xf32, #tpu.memory_space<vmem>>, vector<16x128xf32>
    tpu.vector_store %arg2[%c0_129, %c0_130], %386 {strides = array<i32>} : memref<16x128xf32, #tpu.memory_space<vmem>>, vector<16x128xf32>,
    return
  }
  func.func @transform_0(%arg0: i32) -> (i32, i32) {
    %c0_i32 = arith.constant 0 : i32
    %c0_i32_0 = arith.constant 0 : i32
    return %arg0, %c0_i32 : i32, i32
  }
  func.func @transform_1(%arg0: i32) -> (i32, i32) {
    %c0_i32 = arith.constant 0 : i32
    %c0_i32_0 = arith.constant 0 : i32
    return %arg0, %c0_i32 : i32, i32
  }
}

</mosaic_0001>

<llo_original>
// kernel: tpu_custom_call.1
$region0: #{tpu_custom_call.1}
  #allocation0 [shape = 'u32[]', space=smem, size = 0x4, offset = 0x4, fixed_abs, tag = 'smem constant byte address 0x4 - core index']
  #allocation1 [shape = 'u32[72,128]{1,0:T(1,128)}', space=vmem, size = 0x9000, scoped, tag = 'internal scratch']
  %s0 = inlined_call_operand.hbm [shape: f32[16,128], index: 0, kind: input, shape index: {}]
  %s1 = inlined_call_operand.hbm [shape: f32[16,128], index: 1, kind: output, shape index: {}]
  %s2 = sld [smem:[#allocation0]]
  $region18: #{tpu_custom_call.1} parent=0
    _
  %s4 = ssub.s32 1, %s2
  %s5 = scalar_select 0, %s4, %s2
  $region1: #{tpu_custom_call.1} parent=0
    #allocation2 [shape = 'u8[8192]{0}', space=vmem, size = 0x2000, scoped, tag = 'input window, operand 0, single buffered']
    #allocation3 [shape = 's32[1]{0}', space=sflag, size = 0x4, scoped, tag = 'scoped memory for tpu_custom_call.1']
    #allocation4 [shape = 's32[1]{0}', space=sflag, size = 0x4, scoped, tag = 'scoped memory for tpu_custom_call.1']
    #allocation5 [shape = 'u8[8192]{0}', space=vmem, size = 0x2000, scoped, tag = 'output window, operand 0, single buffered']
    %6 = vsyncpa [#allocation3], 0
    %7 = vsyncpa [#allocation4], 0
    // Predicated region
    $region2: #{tpu_custom_call.1} parent=1 // pred_check
      _
    $region3: #{tpu_custom_call.1} parent=1 // pred_check_branch
      %9 = sbr.rel (0) target = $region5
    $region4: #{tpu_custom_call.1} parent=1 // pred_region
      %11 = vsyncadd [#allocation3], 0
      %s12 = sshll.u32 %s0, 4
      %s13 = int_to_ptr.hbm [resolvable:$true] %s12
      %s14 = sshll.u32 [#allocation2], 4
      %s15 = int_to_ptr.vmem [resolvable:$true] %s14
      %20 = dma.hbm_to_vmem [thread:$0]  %s13, 256, %s15, [#allocation3], 128, 128, 8
    $region5: #{tpu_custom_call.1} parent=1 // pred_fallthru
      _
    // Predicated region
    $region6: #{tpu_custom_call.1} parent=1 // pred_check
      _
    $region7: #{tpu_custom_call.1} parent=1 // pred_check_branch
      %22 = sbr.rel (0) target = $region9
    $region8: #{tpu_custom_call.1} parent=1 // pred_region
      %24 = dma.done [#allocation3], 256
    $region9: #{tpu_custom_call.1} parent=1 // pred_fallthru
      _
    %v25 = vld [vmem:[#allocation2] sm:$0xff]
    %v26 = vld [vmem:[#allocation2 + $0x8] sm:$0xff]
    %27 = vmax.xlane.f32.xlu0 %v25
    %v28 = vpop.xlane.xlu0 %27
    %29 = vmax.xlane.f32.xlu0 %v26
    %v30 = vpop.xlane.xlu0 %29
    %v31 = vsub.f32 %v25, %v28
    %v32 = vsub.f32 %v26, %v30
    %v33 = vsub.f32 %v31, -0.5
    %v34 = vsub.f32 %v32, -0.5
    %v35 = vmax.f32 %v33, 0.0
    %v36 = vmax.f32 %v34, 0.0
    %37 = vadd.xlane.f32.xlu0 %v35
    %v38 = vpop.xlane.xlu0 %37
    %39 = vadd.xlane.f32.xlu0 %v36
    %v40 = vpop.xlane.xlu0 %39
    %v41 = vsub.f32 %v38, 1.0
    %v42 = vsub.f32 %v40, 1.0
    %vm43 = vcmp.gt.f32.partialorder %v41, 0.0
    %vm44 = vcmp.gt.f32.partialorder %v42, 0.0
    %v45 = vsel %vm43, -0.5, -1.0
    %v46 = vsel %vm44, -0.5, -1.0
    %v47 = vsel %vm43, 0.0, -0.5
    %v48 = vsel %vm44, 0.0, -0.5
    %v49 = vadd.f32 %v45, %v47
    %v50 = vadd.f32 %v46, %v48
    %v51 = vmul.f32 %v49, 0.5
    %v52 = vmul.f32 %v50, 0.5
    %v53 = vsub.f32 %v31, %v51
    %v54 = vsub.f32 %v32, %v52
    %v55 = vmax.f32 %v53, 0.0
    %v56 = vmax.f32 %v54, 0.0
    %57 = vadd.xlane.f32.xlu0 %v55
    %v58 = vpop.xlane.xlu0 %57
    %59 = vadd.xlane.f32.xlu0 %v56
    %v60 = vpop.xlane.xlu0 %59
    %v61 = vsub.f32 %v58, 1.0
    %v62 = vsub.f32 %v60, 1.0
    %vm63 = vcmp.gt.f32.partialorder %v61, 0.0
    %vm64 = vcmp.gt.f32.partialorder %v62, 0.0
    %v65 = vsel %vm63, %v51, %v45
    %v66 = vsel %vm64, %v52, %v46
    %v67 = vsel %vm63, %v47, %v51
    %v68 = vsel %vm64, %v48, %v52
    %v69 = vadd.f32 %v65, %v67
    %v70 = vadd.f32 %v66, %v68
    %v71 = vmul.f32 %v69, 0.5
    %v72 = vmul.f32 %v70, 0.5
    %v73 = vsub.f32 %v31, %v71
    %v74 = vsub.f32 %v32, %v72
    %v75 = vmax.f32 %v73, 0.0
    %v76 = vmax.f32 %v74, 0.0
    %77 = vadd.xlane.f32.xlu0 %v75
    %v78 = vpop.xlane.xlu0 %77
    %79 = vadd.xlane.f32.xlu0 %v76
    %v80 = vpop.xlane.xlu0 %79
    %v81 = vsub.f32 %v78, 1.0
    %v82 = vsub.f32 %v80, 1.0
    %vm83 = vcmp.gt.f32.partialorder %v81, 0.0
    %vm84 = vcmp.gt.f32.partialorder %v82, 0.0
    %v85 = vsel %vm83, %v71, %v65
    %v86 = vsel %vm84, %v72, %v66
    %v87 = vsel %vm83, %v67, %v71
    %v88 = vsel %vm84, %v68, %v72
    %v89 = vadd.f32 %v85, %v87
    %v90 = vadd.f32 %v86, %v88
    %v91 = vmul.f32 %v89, 0.5
    %v92 = vmul.f32 %v90, 0.5
    %v93 = vsub.f32 %v31, %v91
    %v94 = vsub.f32 %v32, %v92
    %v95 = vmax.f32 %v93, 0.0
    %v96 = vmax.f32 %v94, 0.0
    %97 = vadd.xlane.f32.xlu0 %v95
    %v98 = vpop.xlane.xlu0 %97
    %99 = vadd.xlane.f32.xlu0 %v96
    %v100 = vpop.xlane.xlu0 %99
    %v101 = vsub.f32 %v98, 1.0
    %v102 = vsub.f32 %v100, 1.0
    %vm103 = vcmp.gt.f32.partialorder %v101, 0.0
    %vm104 = vcmp.gt.f32.partialorder %v102, 0.0
    %v105 = vsel %vm103, %v91, %v85
    %v106 = vsel %vm104, %v92, %v86
    %v107 = vsel %vm103, %v87, %v91
    %v108 = vsel %vm104, %v88, %v92
    %v109 = vadd.f32 %v105, %v107
    %v110 = vadd.f32 %v106, %v108
    %v111 = vmul.f32 %v109, 0.5
    %v112 = vmul.f32 %v110, 0.5
    %v113 = vsub.f32 %v31, %v111
    %v114 = vsub.f32 %v32, %v112
    %v115 = vmax.f32 %v113, 0.0
    %v116 = vmax.f32 %v114, 0.0
    %117 = vadd.xlane.f32.xlu0 %v115
    %v118 = vpop.xlane.xlu0 %117
    %119 = vadd.xlane.f32.xlu0 %v116
    %v120 = vpop.xlane.xlu0 %119
    %v121 = vsub.f32 %v118, 1.0
    %v122 = vsub.f32 %v120, 1.0
    %vm123 = vcmp.gt.f32.partialorder %v121, 0.0
    %vm124 = vcmp.gt.f32.partialorder %v122, 0.0
    %v125 = vsel %vm123, %v111, %v105
    %v126 = vsel %vm124, %v112, %v106
    %v127 = vsel %vm123, %v107, %v111
    %v128 = vsel %vm124, %v108, %v112
    %v129 = vadd.f32 %v125, %v127
    %v130 = vadd.f32 %v126, %v128
    %v131 = vmul.f32 %v129, 0.5
    %v132 = vmul.f32 %v130, 0.5
    %v133 = vsub.f32 %v31, %v131
    %v134 = vsub.f32 %v32, %v132
    %v135 = vmax.f32 %v133, 0.0
    %v136 = vmax.f32 %v134, 0.0
    %137 = vadd.xlane.f32.xlu0 %v135
    %v138 = vpop.xlane.xlu0 %137
    %139 = vadd.xlane.f32.xlu0 %v136
    %v140 = vpop.xlane.xlu0 %139
    %v141 = vsub.f32 %v138, 1.0
    %v142 = vsub.f32 %v140, 1.0
    %vm143 = vcmp.gt.f32.partialorder %v141, 0.0
    %vm144 = vcmp.gt.f32.partialorder %v142, 0.0
    %v145 = vsel %vm143, %v131, %v125
    %v146 = vsel %vm144, %v132, %v126
    %v147 = vsel %vm143, %v127, %v131
    %v148 = vsel %vm144, %v128, %v132
    %v149 = vadd.f32 %v145, %v147
    %v150 = vadd.f32 %v146, %v148
    %v151 = vmul.f32 %v149, 0.5
    %v152 = vmul.f32 %v150, 0.5
    %v153 = vsub.f32 %v31, %v151
    %v154 = vsub.f32 %v32, %v152
    %v155 = vmax.f32 %v153, 0.0
    %v156 = vmax.f32 %v154, 0.0
    %157 = vadd.xlane.f32.xlu0 %v155
    %v158 = vpop.xlane.xlu0 %157
    %159 = vadd.xlane.f32.xlu0 %v156
    %v160 = vpop.xlane.xlu0 %159
    %v161 = vsub.f32 %v158, 1.0
    %v162 = vsub.f32 %v160, 1.0
    %vm163 = vcmp.gt.f32.partialorder %v161, 0.0
    %vm164 = vcmp.gt.f32.partialorder %v162, 0.0
    %v165 = vsel %vm163, %v151, %v145
    %v166 = vsel %vm164, %v152, %v146
    %v167 = vsel %vm163, %v147, %v151
    %v168 = vsel %vm164, %v148, %v152
    %v169 = vadd.f32 %v165, %v167
    %v170 = vadd.f32 %v166, %v168
    %v171 = vmul.f32 %v169, 0.5
    %v172 = vmul.f32 %v170, 0.5
    %v173 = vsub.f32 %v31, %v171
    %v174 = vsub.f32 %v32, %v172
    %v175 = vmax.f32 %v173, 0.0
    %v176 = vmax.f32 %v174, 0.0
    %177 = vadd.xlane.f32.xlu0 %v175
    %v178 = vpop.xlane.xlu0 %177
    %179 = vadd.xlane.f32.xlu0 %v176
    %v180 = vpop.xlane.xlu0 %179
    %v181 = vsub.f32 %v178, 1.0
    %v182 = vsub.f32 %v180, 1.0
    %vm183 = vcmp.gt.f32.partialorder %v181, 0.0
    %vm184 = vcmp.gt.f32.partialorder %v182, 0.0
    %v185 = vsel %vm183, %v171, %v165
    %v186 = vsel %vm184, %v172, %v166
    %v187 = vsel %vm183, %v167, %v171
    %v188 = vsel %vm184, %v168, %v172
    %v189 = vadd.f32 %v185, %v187
    %v190 = vadd.f32 %v186, %v188
    %v191 = vmul.f32 %v189, 0.5
    %v192 = vmul.f32 %v190, 0.5
    %v193 = vsub.f32 %v31, %v191
    %v194 = vsub.f32 %v32, %v192
    %v195 = vmax.f32 %v193, 0.0
    %v196 = vmax.f32 %v194, 0.0
    %197 = vadd.xlane.f32.xlu0 %v195
    %v198 = vpop.xlane.xlu0 %197
    %199 = vadd.xlane.f32.xlu0 %v196
    %v200 = vpop.xlane.xlu0 %199
    %v201 = vsub.f32 %v198, 1.0
    %v202 = vsub.f32 %v200, 1.0
    %vm203 = vcmp.gt.f32.partialorder %v201, 0.0
    %vm204 = vcmp.gt.f32.partialorder %v202, 0.0
    %v205 = vsel %vm203, %v191, %v185
    %v206 = vsel %vm204, %v192, %v186
    %v207 = vsel %vm203, %v187, %v191
    %v208 = vsel %vm204, %v188, %v192
    %v209 = vadd.f32 %v205, %v207
    %v210 = vadd.f32 %v206, %v208
    %v211 = vmul.f32 %v209, 0.5
    %v212 = vmul.f32 %v210, 0.5
    %v213 = vsub.f32 %v31, %v211
    %v214 = vsub.f32 %v32, %v212
    %v215 = vmax.f32 %v213, 0.0
    %v216 = vmax.f32 %v214, 0.0
    %217 = vadd.xlane.f32.xlu0 %v215
    %v218 = vpop.xlane.xlu0 %217
    %219 = vadd.xlane.f32.xlu0 %v216
    %v220 = vpop.xlane.xlu0 %219
    %v221 = vsub.f32 %v218, 1.0
    %v222 = vsub.f32 %v220, 1.0
    %vm223 = vcmp.gt.f32.partialorder %v221, 0.0
    %vm224 = vcmp.gt.f32.partialorder %v222, 0.0
    %v225 = vsel %vm223, %v211, %v205
    %v226 = vsel %vm224, %v212, %v206
    %v227 = vsel %vm223, %v207, %v211
    %v228 = vsel %vm224, %v208, %v212
    %v229 = vadd.f32 %v225, %v227
    %v230 = vadd.f32 %v226, %v228
    %v231 = vmul.f32 %v229, 0.5
    %v232 = vmul.f32 %v230, 0.5
    %v233 = vsub.f32 %v31, %v231
    %v234 = vsub.f32 %v32, %v232
    %v235 = vmax.f32 %v233, 0.0
    %v236 = vmax.f32 %v234, 0.0
    %237 = vadd.xlane.f32.xlu0 %v235
    %v238 = vpop.xlane.xlu0 %237
    %239 = vadd.xlane.f32.xlu0 %v236
    %v240 = vpop.xlane.xlu0 %239
    %v241 = vsub.f32 %v238, 1.0
    %v242 = vsub.f32 %v240, 1.0
    %vm243 = vcmp.gt.f32.partialorder %v241, 0.0
    %vm244 = vcmp.gt.f32.partialorder %v242, 0.0
    %v245 = vsel %vm243, %v231, %v225
    %v246 = vsel %vm244, %v232, %v226
    %v247 = vsel %vm243, %v227, %v231
    %v248 = vsel %vm244, %v228, %v232
    %v249 = vadd.f32 %v245, %v247
    %v250 = vadd.f32 %v246, %v248
    %v251 = vmul.f32 %v249, 0.5
    %v252 = vmul.f32 %v250, 0.5
    %v253 = vsub.f32 %v31, %v251
    %v254 = vsub.f32 %v32, %v252
    %v255 = vmax.f32 %v253, 0.0
    %v256 = vmax.f32 %v254, 0.0
    %257 = vadd.xlane.f32.xlu0 %v255
    %v258 = vpop.xlane.xlu0 %257
    %259 = vadd.xlane.f32.xlu0 %v256
    %v260 = vpop.xlane.xlu0 %259
    %v261 = vsub.f32 %v258, 1.0
    %v262 = vsub.f32 %v260, 1.0
    %vm263 = vcmp.gt.f32.partialorder %v261, 0.0
    %vm264 = vcmp.gt.f32.partialorder %v262, 0.0
    %v265 = vsel %vm263, %v251, %v245
    %v266 = vsel %vm264, %v252, %v246
    %v267 = vsel %vm263, %v247, %v251
    %v268 = vsel %vm264, %v248, %v252
    %v269 = vadd.f32 %v265, %v267
    %v270 = vadd.f32 %v266, %v268
    %v271 = vmul.f32 %v269, 0.5
    %v272 = vmul.f32 %v270, 0.5
    %v273 = vsub.f32 %v31, %v271
    %v274 = vsub.f32 %v32, %v272
    %v275 = vmax.f32 %v273, 0.0
    %v276 = vmax.f32 %v274, 0.0
    %277 = vadd.xlane.f32.xlu0 %v275
    %v278 = vpop.xlane.xlu0 %277
    %279 = vadd.xlane.f32.xlu0 %v276
    %v280 = vpop.xlane.xlu0 %279
    %v281 = vsub.f32 %v278, 1.0
    %v282 = vsub.f32 %v280, 1.0
    %vm283 = vcmp.gt.f32.partialorder %v281, 0.0
    %vm284 = vcmp.gt.f32.partialorder %v282, 0.0
    %v285 = vsel %vm283, %v271, %v265
    %v286 = vsel %vm284, %v272, %v266
    %v287 = vsel %vm283, %v267, %v271
    %v288 = vsel %vm284, %v268, %v272
    %v289 = vadd.f32 %v285, %v287
    %v290 = vadd.f32 %v286, %v288
    %v291 = vmul.f32 %v289, 0.5
    %v292 = vmul.f32 %v290, 0.5
    %v293 = vsub.f32 %v31, %v291
    %v294 = vsub.f32 %v32, %v292
    %v295 = vmax.f32 %v293, 0.0
    %v296 = vmax.f32 %v294, 0.0
    %297 = vadd.xlane.f32.xlu0 %v295
    %v298 = vpop.xlane.xlu0 %297
    %299 = vadd.xlane.f32.xlu0 %v296
    %v300 = vpop.xlane.xlu0 %299
    %v301 = vsub.f32 %v298, 1.0
    %v302 = vsub.f32 %v300, 1.0
    %vm303 = vcmp.gt.f32.partialorder %v301, 0.0
    %vm304 = vcmp.gt.f32.partialorder %v302, 0.0
    %v305 = vsel %vm303, %v291, %v285
    %v306 = vsel %vm304, %v292, %v286
    %v307 = vsel %vm303, %v287, %v291
    %v308 = vsel %vm304, %v288, %v292
    %v309 = vadd.f32 %v305, %v307
    %v310 = vadd.f32 %v306, %v308
    %v311 = vmul.f32 %v309, 0.5
    %v312 = vmul.f32 %v310, 0.5
    %v313 = vsub.f32 %v31, %v311
    %v314 = vsub.f32 %v32, %v312
    %v315 = vmax.f32 %v313, 0.0
    %v316 = vmax.f32 %v314, 0.0
    %317 = vadd.xlane.f32.xlu0 %v315
    %v318 = vpop.xlane.xlu0 %317
    %319 = vadd.xlane.f32.xlu0 %v316
    %v320 = vpop.xlane.xlu0 %319
    %v321 = vsub.f32 %v318, 1.0
    %v322 = vsub.f32 %v320, 1.0
    %vm323 = vcmp.gt.f32.partialorder %v321, 0.0
    %vm324 = vcmp.gt.f32.partialorder %v322, 0.0
    %v325 = vsel %vm323, %v311, %v305
    %v326 = vsel %vm324, %v312, %v306
    %v327 = vsel %vm323, %v307, %v311
    %v328 = vsel %vm324, %v308, %v312
    %v329 = vadd.f32 %v325, %v327
    %v330 = vadd.f32 %v326, %v328
    %v331 = vmul.f32 %v329, 0.5
    %v332 = vmul.f32 %v330, 0.5
    %v333 = vsub.f32 %v31, %v331
    %v334 = vsub.f32 %v32, %v332
    %v335 = vmax.f32 %v333, 0.0
    %v336 = vmax.f32 %v334, 0.0
    %337 = vadd.xlane.f32.xlu0 %v335
    %v338 = vpop.xlane.xlu0 %337
    %339 = vadd.xlane.f32.xlu0 %v336
    %v340 = vpop.xlane.xlu0 %339
    %v341 = vsub.f32 %v338, 1.0
    %v342 = vsub.f32 %v340, 1.0
    %vm343 = vcmp.gt.f32.partialorder %v341, 0.0
    %vm344 = vcmp.gt.f32.partialorder %v342, 0.0
    %v345 = vsel %vm343, %v331, %v325
    %v346 = vsel %vm344, %v332, %v326
    %v347 = vsel %vm343, %v327, %v331
    %v348 = vsel %vm344, %v328, %v332
    %v349 = vadd.f32 %v345, %v347
    %v350 = vadd.f32 %v346, %v348
    %v351 = vmul.f32 %v349, 0.5
    %v352 = vmul.f32 %v350, 0.5
    %v353 = vsub.f32 %v31, %v351
    %v354 = vsub.f32 %v32, %v352
    %v355 = vmax.f32 %v353, 0.0
    %v356 = vmax.f32 %v354, 0.0
    %357 = vadd.xlane.f32.xlu0 %v355
    %v358 = vpop.xlane.xlu0 %357
    %359 = vadd.xlane.f32.xlu0 %v356
    %v360 = vpop.xlane.xlu0 %359
    %v361 = vsub.f32 %v358, 1.0
    %v362 = vsub.f32 %v360, 1.0
    %vm363 = vcmp.gt.f32.partialorder %v361, 0.0
    %vm364 = vcmp.gt.f32.partialorder %v362, 0.0
    %v365 = vsel %vm363, %v351, %v345
    %v366 = vsel %vm364, %v352, %v346
    %v367 = vsel %vm363, %v347, %v351
    %v368 = vsel %vm364, %v348, %v352
    %v369 = vadd.f32 %v365, %v367
    %v370 = vadd.f32 %v366, %v368
    %v371 = vmul.f32 %v369, 0.5
    %v372 = vmul.f32 %v370, 0.5
    %v373 = vsub.f32 %v31, %v371
    %v374 = vsub.f32 %v32, %v372
    %v375 = vmax.f32 %v373, 0.0
    %v376 = vmax.f32 %v374, 0.0
    %377 = vadd.xlane.f32.xlu0 %v375
    %v378 = vpop.xlane.xlu0 %377
    %379 = vadd.xlane.f32.xlu0 %v376
    %v380 = vpop.xlane.xlu0 %379
    %v381 = vsub.f32 %v378, 1.0
    %v382 = vsub.f32 %v380, 1.0
    %vm383 = vcmp.gt.f32.partialorder %v381, 0.0
    %vm384 = vcmp.gt.f32.partialorder %v382, 0.0
    %v385 = vsel %vm383, %v371, %v365
    %v386 = vsel %vm384, %v372, %v366
    %v387 = vsel %vm383, %v367, %v371
    %v388 = vsel %vm384, %v368, %v372
    %v389 = vadd.f32 %v385, %v387
    %v390 = vadd.f32 %v386, %v388
    %v391 = vmul.f32 %v389, 0.5
    %v392 = vmul.f32 %v390, 0.5
    %v393 = vsub.f32 %v31, %v391
    %v394 = vsub.f32 %v32, %v392
    %v395 = vmax.f32 %v393, 0.0
    %v396 = vmax.f32 %v394, 0.0
    %397 = vadd.xlane.f32.xlu0 %v395
    %v398 = vpop.xlane.xlu0 %397
    %399 = vadd.xlane.f32.xlu0 %v396
    %v400 = vpop.xlane.xlu0 %399
    %v401 = vsub.f32 %v398, 1.0
    %v402 = vsub.f32 %v400, 1.0
    %vm403 = vcmp.gt.f32.partialorder %v401, 0.0
    %vm404 = vcmp.gt.f32.partialorder %v402, 0.0
    %v405 = vsel %vm403, %v391, %v385
    %v406 = vsel %vm404, %v392, %v386
    %v407 = vsel %vm403, %v387, %v391
    %v408 = vsel %vm404, %v388, %v392
    %v409 = vadd.f32 %v405, %v407
    %v410 = vadd.f32 %v406, %v408
    %v411 = vmul.f32 %v409, 0.5
    %v412 = vmul.f32 %v410, 0.5
    %v413 = vsub.f32 %v31, %v411
    %v414 = vsub.f32 %v32, %v412
    %v415 = vmax.f32 %v413, 0.0
    %v416 = vmax.f32 %v414, 0.0
    %417 = vadd.xlane.f32.xlu0 %v415
    %v418 = vpop.xlane.xlu0 %417
    %419 = vadd.xlane.f32.xlu0 %v416
    %v420 = vpop.xlane.xlu0 %419
    %v421 = vsub.f32 %v418, 1.0
    %v422 = vsub.f32 %v420, 1.0
    %vm423 = vcmp.gt.f32.partialorder %v421, 0.0
    %vm424 = vcmp.gt.f32.partialorder %v422, 0.0
    %v425 = vsel %vm423, %v411, %v405
    %v426 = vsel %vm424, %v412, %v406
    %v427 = vsel %vm423, %v407, %v411
    %v428 = vsel %vm424, %v408, %v412
    %v429 = vadd.f32 %v425, %v427
    %v430 = vadd.f32 %v426, %v428
    %v431 = vmul.f32 %v429, 0.5
    %v432 = vmul.f32 %v430, 0.5
    %v433 = vsub.f32 %v31, %v431
    %v434 = vsub.f32 %v32, %v432
    %v435 = vmax.f32 %v433, 0.0
    %v436 = vmax.f32 %v434, 0.0
    %437 = vadd.xlane.f32.xlu0 %v435
    %v438 = vpop.xlane.xlu0 %437
    %439 = vadd.xlane.f32.xlu0 %v436
    %v440 = vpop.xlane.xlu0 %439
    %v441 = vsub.f32 %v438, 1.0
    %v442 = vsub.f32 %v440, 1.0
    %vm443 = vcmp.gt.f32.partialorder %v441, 0.0
    %vm444 = vcmp.gt.f32.partialorder %v442, 0.0
    %v445 = vsel %vm443, %v431, %v425
    %v446 = vsel %vm444, %v432, %v426
    %v447 = vsel %vm443, %v427, %v431
    %v448 = vsel %vm444, %v428, %v432
    %v449 = vadd.f32 %v445, %v447
    %v450 = vadd.f32 %v446, %v448
    %v451 = vmul.f32 %v449, 0.5
    %v452 = vmul.f32 %v450, 0.5
    %v453 = vsub.f32 %v31, %v451
    %v454 = vsub.f32 %v32, %v452
    %v455 = vmax.f32 %v453, 0.0
    %v456 = vmax.f32 %v454, 0.0
    %457 = vadd.xlane.f32.xlu0 %v455
    %v458 = vpop.xlane.xlu0 %457
    %459 = vadd.xlane.f32.xlu0 %v456
    %v460 = vpop.xlane.xlu0 %459
    %v461 = vsub.f32 %v458, 1.0
    %v462 = vsub.f32 %v460, 1.0
    %vm463 = vcmp.gt.f32.partialorder %v461, 0.0
    %vm464 = vcmp.gt.f32.partialorder %v462, 0.0
    %v465 = vsel %vm463, %v451, %v445
    %v466 = vsel %vm464, %v452, %v446
    %v467 = vsel %vm463, %v447, %v451
    %v468 = vsel %vm464, %v448, %v452
    %v469 = vadd.f32 %v465, %v467
    %v470 = vadd.f32 %v466, %v468
    %v471 = vmul.f32 %v469, 0.5
    %v472 = vmul.f32 %v470, 0.5
    %v473 = vsub.f32 %v31, %v471
    %v474 = vsub.f32 %v32, %v472
    %v475 = vmax.f32 %v473, 0.0
    %v476 = vmax.f32 %v474, 0.0
    %477 = vadd.xlane.f32.xlu0 %v475
    %v478 = vpop.xlane.xlu0 %477
    %479 = vadd.xlane.f32.xlu0 %v476
    %v480 = vpop.xlane.xlu0 %479
    %v481 = vsub.f32 %v478, 1.0
    %v482 = vsub.f32 %v480, 1.0
    %vm483 = vcmp.gt.f32.partialorder %v481, 0.0
    %vm484 = vcmp.gt.f32.partialorder %v482, 0.0
    %v485 = vsel %vm483, %v471, %v465
    %v486 = vsel %vm484, %v472, %v466
    %v487 = vsel %vm483, %v467, %v471
    %v488 = vsel %vm484, %v468, %v472
    %v489 = vadd.f32 %v485, %v487
    %v490 = vadd.f32 %v486, %v488
    %v491 = vmul.f32 %v489, 0.5
    %v492 = vmul.f32 %v490, 0.5
    %v493 = vsub.f32 %v31, %v491
    %v494 = vsub.f32 %v32, %v492
    %v495 = vmax.f32 %v493, 0.0
    %v496 = vmax.f32 %v494, 0.0
    %497 = vadd.xlane.f32.xlu0 %v495
    %v498 = vpop.xlane.xlu0 %497
    %499 = vadd.xlane.f32.xlu0 %v496
    %v500 = vpop.xlane.xlu0 %499
    %v501 = vsub.f32 %v498, 1.0
    %v502 = vsub.f32 %v500, 1.0
    %vm503 = vcmp.gt.f32.partialorder %v501, 0.0
    %vm504 = vcmp.gt.f32.partialorder %v502, 0.0
    %v505 = vsel %vm503, %v491, %v485
    %v506 = vsel %vm504, %v492, %v486
    %v507 = vsel %vm503, %v487, %v491
    %v508 = vsel %vm504, %v488, %v492
    %v509 = vadd.f32 %v505, %v507
    %v510 = vadd.f32 %v506, %v508
    %v511 = vmul.f32 %v509, 0.5
    %v512 = vmul.f32 %v510, 0.5
    %vm513 = vcmp.gt.f32.partialorder %v31, %v511
    %vm514 = vcmp.gt.f32.partialorder %v32, %v512
    %v515 = vsel %vm513, 1, 0
    %v516 = vsel %vm514, 1, 0
    %v517 = vcvt.s32.f32 %v515
    %v518 = vcvt.s32.f32 %v516
    %519 = vadd.xlane.f32.xlu0 %v517
    %v520 = vpop.xlane.xlu0 %519
    %521 = vadd.xlane.f32.xlu0 %v518
    %v522 = vpop.xlane.xlu0 %521
    %v523 = vsel %vm513, %v31, 0.0
    %v524 = vsel %vm514, %v32, 0.0
    %525 = vadd.xlane.f32.xlu0 %v523
    %v526 = vpop.xlane.xlu0 %525
    %527 = vadd.xlane.f32.xlu0 %v524
    %v528 = vpop.xlane.xlu0 %527
    %v529 = vsub.f32 %v526, 1.0
    %v530 = vsub.f32 %v528, 1.0
    %v531 = vrcp.pop %v520
    %v532 = vmul.f32 %v520, %v531
    %v533 = vsub.f32 1.0, %v532
    %v534 = vmul.f32 %v531, %v533
    %v535 = vadd.f32 %v531, %v534
    %vm536 = vweird.f32 %v520
    %vm537 = vweird.f32 %v531
    %vm538 = vmor %vm536, %vm537
    %v539 = vsel %vm538, %v531, %v535
    %v540 = vand.u32 2147483647, %v520
    %vm541 = vcmp.eq.f32.partialorder %v540, 8.507059e+37
    %v542 = vand.u32 %v520, 2147483648
    %v543 = vor.u32 1.1754944e-38, %v542
    %v544 = vsel %vm541, %v543, %v539
    %v545 = vmul.f32 %v529, %v544
    %v546 = vrcp.pop %v522
    %v547 = vmul.f32 %v522, %v546
    %v548 = vsub.f32 1.0, %v547
    %v549 = vmul.f32 %v546, %v548
    %v550 = vadd.f32 %v546, %v549
    %vm551 = vweird.f32 %v522
    %vm552 = vweird.f32 %v546
    %vm553 = vmor %vm551, %vm552
    %v554 = vsel %vm553, %v546, %v550
    %v555 = vand.u32 2147483647, %v522
    %vm556 = vcmp.eq.f32.partialorder %v555, 8.507059e+37
    %v557 = vand.u32 %v522, 2147483648
    %v558 = vor.u32 1.1754944e-38, %v557
    %v559 = vsel %vm556, %v558, %v554
    %v560 = vmul.f32 %v530, %v559
    %v561 = vsub.f32 %v31, %v545
    %v562 = vsub.f32 %v32, %v560
    %v563 = vmax.f32 %v561, 0.0
    %v564 = vmax.f32 %v562, 0.0
    %565 = vst [vmem:[#allocation5] sm:$0xff] %v563
    %566 = vst [vmem:[#allocation5 + $0x8] sm:$0xff] %v564
    // Predicated region
    $region10: #{tpu_custom_call.1} parent=1 // pred_check
      _
    $region11: #{tpu_custom_call.1} parent=1 // pred_check_branch
      %568 = sbr.rel (0) target = $region13
    $region12: #{tpu_custom_call.1} parent=1 // pred_region
      %570 = vsyncadd [#allocation4], 0
      %s571 = sshll.u32 [#allocation5], 4
      %s572 = int_to_ptr.vmem [resolvable:$true] %s571
      %s573 = sshll.u32 %s1, 4
      %s574 = int_to_ptr.hbm [resolvable:$true] %s573
      %579 = dma.vmem_to_hbm [thread:$0]  %s572, 256, %s574, [#allocation4], 128, 128, 8
    $region13: #{tpu_custom_call.1} parent=1 // pred_fallthru
      _
    // Predicated region
    $region14: #{tpu_custom_call.1} parent=1 // pred_check
      _
    $region15: #{tpu_custom_call.1} parent=1 // pred_check_branch
      %581 = sbr.rel (0) target = $region17
    $region16: #{tpu_custom_call.1} parent=1 // pred_region
      %583 = dma.done [#allocation4], 256
    $region17: #{tpu_custom_call.1} parent=1 // pred_fallthru
      _
    %584 = vsyncpa [#allocation3], 1
    %585 = vsyncpa [#allocation4], 1

</llo_original>
